<compile_context>
chip_gen: v7x
topology: tpu7x:2x2x1
jax: 0.10.0
libtpu: 0.0.40
codegen_flags: <defaults>
</compile_context>

<pallas_src>
import jax
import jax.numpy as jnp
from jax.experimental import pallas as pl
from jax.experimental.pallas import tpu as pltpu


def _round_up(x, m):
    return (x + m - 1) // m * m


def _channelmix_kernel(xx_ref, wkvr_ref, bkvr_ref, ww_ref, bw_ref, o_ref):
    """One (tm, C) row tile of the fused k/v/r -> mish*v -> wkv -> sigmoid-gate chain."""
    hp = ww_ref.shape[0]                       # padded hidden width (multiple of 128)

    xx = xx_ref[...]                           # storage dtype straight into the MXU

    # Fused K|V|R projection: one MXU pass over the shared LHS, f32 accumulation.
    kvr = jnp.dot(xx, wkvr_ref[...], preferred_element_type=jnp.float32)
    kvr = kvr + bkvr_ref[...].astype(jnp.float32)

    k = kvr[:, :hp]                            # 128-aligned lane slices
    v = kvr[:, hp:2 * hp]

    # mish(k) = k * tanh(softplus(k)); with t = exp(k):
    #   tanh(softplus(k)) = (t^2 + 2t) / (t^2 + 2t + 2)
    # -> one EUP exp + one approx reciprocal per element (was exp+log1p+tanh).
    t = jnp.exp(jnp.minimum(k, 20.0))          # clamp: formula already saturates to 1.0
    num = t * (t + 2.0)
    mish_k = k * (num * pl.reciprocal(num + 2.0, approx=True))

    kv = (mish_k * v).astype(ww_ref.dtype)     # back to weight dtype for the 2nd matmul
    wkv = jnp.dot(kv, ww_ref[...], preferred_element_type=jnp.float32)
    wkv = wkv + bw_ref[...].astype(jnp.float32)

    # Receptance gate computed last (short f32 live range across the matmul region).
    r = kvr[:, 2 * hp:]
    gate = pl.reciprocal(1.0 + jnp.exp(jnp.minimum(-r, 30.0)), approx=True)

    o_ref[...] = (gate * wkv).astype(o_ref.dtype)


def _device_defaults():
    """(block_rows, vmem_limit_bytes) tuned per TPU generation."""
    kind = ""
    try:
        kind = jax.devices()[0].device_kind.lower()
    except Exception:
        pass
    if "v7" in kind:                 # 64 MiB VMEM per TensorCore -> smaller budget
        return 512, 48 * 1024 * 1024
    if "v6" in kind:                 # 128 MiB VMEM, 256x256 MXU -> big row tiles
        return 1024, 96 * 1024 * 1024
    if "v5" in kind:                 # 128 MiB VMEM, 128x128 MXU
        return 512, 64 * 1024 * 1024
    return 512, 64 * 1024 * 1024


def _pick_tile_rows(rows, block_rows, align):
    """Largest sublane-aligned row tile <= block_rows; prefer one dividing `rows`
    exactly so no HBM padding copy is needed."""
    cap = min(block_rows, rows)
    cap = max(align, cap - cap % align)
    if rows <= cap:
        return rows, False           # single full-extent tile (always layout-legal)
    best = 0
    m = align
    while m <= cap:
        if rows % m == 0:
            best = m
        m += align
    if best >= align and best * 4 >= cap:
        return best, False           # good-enough divisor tile: no padding
    return cap, True                 # fall back to padded rows


def rwkv_channelmix(x, wk, bk, wv, bv, wr, br, ww, bw, *,
                    block_rows=None, vmem_limit_bytes=None, compute_dtype=None):
    """Fused RWKV ChannelMix forward.  x: (B, T, C); weights are (in, out)."""
    B, T, C = x.shape
    H = wk.shape[1]
    half = C // 2
    hp = _round_up(H, 128)           # lane-dense hidden width
    wn = 2 * hp + C                  # packed K|V|R output width

    dflt_rows, dflt_vmem = _device_defaults()
    if block_rows is None:
        block_rows = dflt_rows
    if vmem_limit_bytes is None:
        vmem_limit_bytes = dflt_vmem

    # TODO(synk): fuse the time_shift + channel concat into the kernel (full-T row
    # tiles + in-tile sublane shift) to save one HBM round trip of the input; kept in
    # the XLA wrapper here to stay on well-supported lowering paths.
    x_shift = jnp.pad(x[:, :-1, :half], ((0, 0), (1, 0), (0, 0)))
    xx = jnp.concatenate([x_shift, x[:, :, half:]], axis=-1)

    # Pack Wk|Wv|Wr into one operand; zero-pad hidden columns/rows to hp so the k/v
    # slices and the kv @ Ww contraction are 128-lane aligned (mish(0)*0 == 0, so the
    # padded columns contribute nothing).
    w_kvr = jnp.concatenate(
        [jnp.pad(wk, ((0, 0), (0, hp - H))),
         jnp.pad(wv, ((0, 0), (0, hp - H))),
         wr], axis=1)
    b_kvr = jnp.concatenate(
        [jnp.pad(bk, (0, hp - H)), jnp.pad(bv, (0, hp - H)), br]).reshape(1, wn)
    ww_p = jnp.pad(ww, ((0, hp - H), (0, 0)))
    bw_p = bw.reshape(1, C)

    if compute_dtype is not None:    # e.g. jnp.bfloat16 for native-rate MXU operands
        xx = xx.astype(compute_dtype)
        w_kvr = w_kvr.astype(compute_dtype)
        ww_p = ww_p.astype(compute_dtype)

    rows = B * T
    x2 = xx.reshape(rows, C)

    align = 16 if jnp.dtype(x2.dtype).itemsize < 4 else 8   # sublane packing of dtype
    tm, need_pad = _pick_tile_rows(rows, block_rows, align)
    padded_rows = rows
    if need_pad:
        padded_rows = _round_up(rows, tm)
        x2 = jnp.pad(x2, ((0, padded_rows - rows), (0, 0)))
    grid = (padded_rows // tm,)

    resident = lambda i: (0, 0)      # weights/biases stay VMEM-resident across row tiles

    isz = lambda a: jnp.dtype(a.dtype).itemsize
    cost = pl.CostEstimate(
        flops=2 * rows * (C * wn + hp * C),
        transcendentals=2 * rows * (hp + C),
        bytes_accessed=(x2.size * isz(x2) + rows * C * isz(x)
                        + w_kvr.size * isz(w_kvr) + ww_p.size * isz(ww_p)
                        + b_kvr.size * isz(b_kvr) + bw_p.size * isz(bw_p)))

    # TODO(synk): once n_embd/hidden_sz grow so the packed weights exceed the per-core
    # VMEM budget (esp. v7x's 64 MiB/TC), tile the hidden (N/K) axes and/or
    # single-buffer the grid-invariant weight blocks instead of keeping them resident.
    out = pl.pallas_call(
        _channelmix_kernel,
        out_shape=jax.ShapeDtypeStruct((padded_rows, C), x.dtype),
        grid_spec=pltpu.PrefetchScalarGridSpec(
            num_scalar_prefetch=0,
            grid=grid,
            in_specs=[
                pl.BlockSpec((tm, C), lambda i: (i, 0)),   # xx row tile
                pl.BlockSpec((C, wn), resident),           # packed Wk|Wv|Wr
                pl.BlockSpec((1, wn), resident),           # packed bk|bv|br
                pl.BlockSpec((hp, C), resident),           # Ww (hidden rows padded)
                pl.BlockSpec((1, C), resident),            # bw
            ],
            out_specs=pl.BlockSpec((tm, C), lambda i: (i, 0)),
        ),
        compiler_params=pltpu.CompilerParams(
            dimension_semantics=("parallel",),             # megacore-shardable rows
            vmem_limit_bytes=vmem_limit_bytes,
        ),
        cost_estimate=cost,
    )(x2, w_kvr, b_kvr, ww_p, bw_p)

    if padded_rows != rows:
        out = out[:rows]
    return out.reshape(B, T, C)


def rwkv_channelmix_reference(x, wk, bk, wv, bv, wr, br, ww, bw):
    B, T, C = x.shape
    half = C // 2
    x_shift = jnp.pad(x[:, :-1, :half], ((0, 0), (1, 0), (0, 0)))
    xx = jnp.concatenate([x_shift, x[:, :, half:]], axis=-1)
    k = xx @ wk + bk
    v = xx @ wv + bv
    r = xx @ wr + br
    mish_k = k * jnp.tanh(jax.nn.softplus(k))
    wkv = (mish_k * v) @ ww + bw
    return jax.nn.sigmoid(r) * wkv


if __name__ == "__main__":
    key = jax.random.PRNGKey(0)
    B, T = 2, 8
    n_embd, n_ffn = 32, 32
    hidden_sz = 5 * n_ffn // 2      # 80, as overridden in the module __init__

    ks = jax.random.split(key, 9)
    x  = jax.random.normal(ks[0], (B, T, n_embd), dtype=jnp.float32)
    wk = jax.random.normal(ks[1], (n_embd, hidden_sz), dtype=jnp.float32) * 0.1
    bk = jax.random.normal(ks[2], (hidden_sz,), dtype=jnp.float32) * 0.1
    wv = jax.random.normal(ks[3], (n_embd, hidden_sz), dtype=jnp.float32) * 0.1
    bv = jax.random.normal(ks[4], (hidden_sz,), dtype=jnp.float32) * 0.1
    wr = jax.random.normal(ks[5], (n_embd, n_embd), dtype=jnp.float32) * 0.1
    br = jax.random.normal(ks[6], (n_embd,), dtype=jnp.float32) * 0.1
    ww = jax.random.normal(ks[7], (hidden_sz, n_embd), dtype=jnp.float32) * 0.1
    bw = jax.random.normal(ks[8], (n_embd,), dtype=jnp.float32) * 0.1

    # block_rows=8 -> two row tiles, exercising the multi-step tiled grid path.
    out = rwkv_channelmix(x, wk, bk, wv, bv, wr, br, ww, bw, block_rows=8)
    out = jax.block_until_ready(out)

    ref = rwkv_channelmix_reference(x, wk, bk, wv, bv, wr, br, ww, bw)
    assert out.shape == x.shape
    max_err = float(jnp.max(jnp.abs(out - ref)))
    # approx-reciprocal (EUP) epilogue -> slightly looser tolerance than pure f32
    assert jnp.allclose(out, ref, atol=2e-3, rtol=2e-3), max_err
    print("KERNEL_OK")
</pallas_src>

<mosaic_0001>
module attributes {stable_mosaic.version = 11 : i64} {
  func.func @_channelmix_kernel(%arg0: i32, %arg1: memref<8x32xf32, #tpu.memory_space<vmem>>, %arg2: memref<32x288xf32, #tpu.memory_space<vmem>>, %arg3: memref<1x288xf32, #tpu.memory_space<vmem>>, %arg4: memref<128x32xf32, #tpu.memory_space<vmem>>, %arg5: memref<1x32xf32, #tpu.memory_space<vmem>>, %arg6: memref<8x32xf32, #tpu.memory_space<vmem>>) attributes {dimension_semantics = [#tpu.dimension_semantics<parallel>], iteration_bounds = array<i64: 2>, scalar_prefetch = 0 : i64, scratch_operands = 0 : i64, tpu.core_type = #tpu.core_type<tc>, window_params = [{transform_indices = @transform_0, window_bounds = array<i64: 8, 32>}, {pipeline_mode = #tpu.pipeline_mode<synchronous>, transform_indices = @transform_1, window_bounds = array<i64: 32, 288>}, {pipeline_mode = #tpu.pipeline_mode<synchronous>, transform_indices = @transform_2, window_bounds = array<i64: 1, 288>}, {pipeline_mode = #tpu.pipeline_mode<synchronous>, transform_indices = @transform_3, window_bounds = array<i64: 128, 32>}, {pipeline_mode = #tpu.pipeline_mode<synchronous>, transform_indices = @transform_4, window_bounds = array<i64: 1, 32>}, {transform_indices = @transform_5, window_bounds = array<i64: 8, 32>}]} {
    %c0 = arith.constant 0 : index
    %c0_0 = arith.constant 0 : index
    %0 = vector.load %arg1[%c0, %c0_0] : memref<8x32xf32, #tpu.memory_space<vmem>>, vector<8x32xf32>
    %c0_1 = arith.constant 0 : index
    %c0_2 = arith.constant 0 : index
    %1 = vector.load %arg2[%c0_1, %c0_2] : memref<32x288xf32, #tpu.memory_space<vmem>>, vector<32x288xf32>
    %cst = arith.constant dense<0.000000e+00> : vector<8x288xf32>
    %2 = tpu.matmul %0, %1, %cst {dimension_numbers = #tpu.dot_dimension_numbers<[1], [0], [0], [1], [0, 0, 1, 1], [], []>} : vector<8x32xf32>, vector<32x288xf32>, vector<8x288xf32> -> vector<8x288xf32>
    %c0_3 = arith.constant 0 : index
    %c0_4 = arith.constant 0 : index
    %3 = vector.load %arg3[%c0_3, %c0_4] : memref<1x288xf32, #tpu.memory_space<vmem>>, vector<1x288xf32>
    %4 = vector.broadcast %3 : vector<1x288xf32> to vector<8x288xf32>
    %5 = arith.addf %2, %4 : vector<8x288xf32>
    %6 = vector.extract_strided_slice %5 {offsets = [0, 0], sizes = [8, 128], strides = [1, 1]} : vector<8x288xf32> to vector<8x128xf32>
    %7 = vector.extract_strided_slice %5 {offsets = [0, 128], sizes = [8, 128], strides = [1, 1]} : vector<8x288xf32> to vector<8x128xf32>
    %cst_5 = arith.constant 2.000000e+01 : f32
    %8 = vector.broadcast %cst_5 : f32 to vector<8x128xf32>
    %9 = arith.minimumf %6, %8 : vector<8x128xf32>
    %10 = math.exp %9 : vector<8x128xf32>
    %cst_6 = arith.constant 2.000000e+00 : f32
    %11 = vector.broadcast %cst_6 : f32 to vector<8x128xf32>
    %12 = arith.addf %10, %11 : vector<8x128xf32>
    %13 = arith.mulf %10, %12 : vector<8x128xf32>
    %cst_7 = arith.constant 2.000000e+00 : f32
    %14 = vector.broadcast %cst_7 : f32 to vector<8x128xf32>
    %15 = arith.addf %13, %14 : vector<8x128xf32>
    %16 = tpu.reciprocal %15 {approx = true} : vector<8x128xf32> -> vector<8x128xf32>
    %17 = arith.mulf %13, %16 : vector<8x128xf32>
    %18 = arith.mulf %6, %17 : vector<8x128xf32>
    %19 = arith.mulf %18, %7 : vector<8x128xf32>
    %c0_8 = arith.constant 0 : index
    %c0_9 = arith.constant 0 : index
    %20 = vector.load %arg4[%c0_8, %c0_9] : memref<128x32xf32, #tpu.memory_space<vmem>>, vector<128x32xf32>
    %cst_10 = arith.constant dense<0.000000e+00> : vector<8x32xf32>
    %21 = tpu.matmul %19, %20, %cst_10 {dimension_numbers = #tpu.dot_dimension_numbers<[1], [0], [0], [1], [0, 0, 1, 1], [], []>} : vector<8x128xf32>, vector<128x32xf32>, vector<8x32xf32> -> vector<8x32xf32>
    %c0_11 = arith.constant 0 : index
    %c0_12 = arith.constant 0 : index
    %22 = vector.load %arg5[%c0_11, %c0_12] : memref<1x32xf32, #tpu.memory_space<vmem>>, vector<1x32xf32>
    %23 = vector.broadcast %22 : vector<1x32xf32> to vector<8x32xf32>
    %24 = arith.addf %21, %23 : vector<8x32xf32>
    %25 = vector.extract_strided_slice %5 {offsets = [0, 256], sizes = [8, 32], strides = [1, 1]} : vector<8x288xf32> to vector<8x32xf32>
    %cst_13 = arith.constant 0.000000e+00 : f32
    %26 = vector.broadcast %cst_13 : f32 to vector<8x32xf32>
    %27 = arith.subf %26, %25 : vector<8x32xf32>
    %cst_14 = arith.constant 3.000000e+01 : f32
    %28 = vector.broadcast %cst_14 : f32 to vector<8x32xf32>
    %29 = arith.minimumf %27, %28 : vector<8x32xf32>
    %30 = math.exp %29 : vector<8x32xf32>
    %cst_15 = arith.constant 1.000000e+00 : f32
    %31 = vector.broadcast %cst_15 : f32 to vector<8x32xf32>
    %32 = arith.addf %31, %30 : vector<8x32xf32>
    %33 = tpu.reciprocal %32 {approx = true} : vector<8x32xf32> -> vector<8x32xf32>
    %34 = arith.mulf %33, %24 : vector<8x32xf32>
    %c0_16 = arith.constant 0 : index
    %c0_17 = arith.constant 0 : index
    %35 = vector.load %arg6[%c0_16, %c0_17] : memref<8x32xf32, #tpu.memory_space<vmem>>, vector<8x32xf32>
    tpu.vector_store %arg6[%c0_16, %c0_17], %34 {strides = array<i32>} : memref<8x32xf32, #tpu.memory_space<vmem>>, vector<8x32xf32>,
    return
  }
  func.func @transform_0(%arg0: i32) -> (i32, i32) {
    %c0_i32 = arith.constant 0 : i32
    %c0_i32_0 = arith.constant 0 : i32
    return %arg0, %c0_i32 : i32, i32
  }
  func.func @transform_1(%arg0: i32) -> (i32, i32) {
    %c0_i32 = arith.constant 0 : i32
    %c0_i32_0 = arith.constant 0 : i32
    %c0_i32_1 = arith.constant 0 : i32
    return %c0_i32, %c0_i32_0 : i32, i32
  }
  func.func @transform_2(%arg0: i32) -> (i32, i32) {
    %c0_i32 = arith.constant 0 : i32
    %c0_i32_0 = arith.constant 0 : i32
    %c0_i32_1 = arith.constant 0 : i32
    return %c0_i32, %c0_i32_0 : i32, i32
  }
  func.func @transform_3(%arg0: i32) -> (i32, i32) {
    %c0_i32 = arith.constant 0 : i32
    %c0_i32_0 = arith.constant 0 : i32
    %c0_i32_1 = arith.constant 0 : i32
    return %c0_i32, %c0_i32_0 : i32, i32
  }
  func.func @transform_4(%arg0: i32) -> (i32, i32) {
    %c0_i32 = arith.constant 0 : i32
    %c0_i32_0 = arith.constant 0 : i32
    %c0_i32_1 = arith.constant 0 : i32
    return %c0_i32, %c0_i32_0 : i32, i32
  }
  func.func @transform_5(%arg0: i32) -> (i32, i32) {
    %c0_i32 = arith.constant 0 : i32
    %c0_i32_0 = arith.constant 0 : i32
    return %arg0, %c0_i32 : i32, i32
  }
}

</mosaic_0001>

<llo_original>
// kernel: tpu_custom_call.1
$region0: #{tpu_custom_call.1}
  #allocation0 [shape = 'u32[]', space=smem, size = 0x4, offset = 0x4, fixed_abs, tag = 'smem constant byte address 0x4 - core index']
  #allocation1 [shape = 'u32[144,128]{1,0:T(1,128)}', space=vmem, size = 0x12000, scoped, tag = 'internal scratch']
  %s0 = inlined_call_operand.hbm [shape: f32[16,32], index: 0, kind: input, shape index: {}]
  %s1 = inlined_call_operand.hbm [shape: f32[32,288], index: 1, kind: input, shape index: {}]
  %s2 = inlined_call_operand.hbm [shape: f32[1,288], index: 2, kind: input, shape index: {}]
  %s3 = inlined_call_operand.hbm [shape: f32[128,32], index: 3, kind: input, shape index: {}]
  %s4 = inlined_call_operand.hbm [shape: f32[1,32], index: 4, kind: input, shape index: {}]
  %s5 = inlined_call_operand.hbm [shape: f32[16,32], index: 5, kind: output, shape index: {}]
  %s6 = sld [smem:[#allocation0]]
  $region73: #{tpu_custom_call.1} parent=0
    _
  %s8 = ssub.s32 1, %s6
  %s9 = scalar_select 0, %s8, %s6
  $region1: #{tpu_custom_call.1} parent=0
    #allocation2 [shape = 'u8[8192]{0}', space=vmem, size = 0x2000, scoped, tag = 'input window, operand 0']
    #allocation3 [shape = 's32[2]{0}', space=sflag, size = 0x8, scoped, tag = 'scoped memory for tpu_custom_call.1']
    #allocation4 [shape = 's32[2]{0}', space=sflag, size = 0x8, scoped, tag = 'scoped memory for tpu_custom_call.1']
    #allocation5 [shape = 'u8[49152]{0}', space=vmem, size = 0xc000, scoped, tag = 'input window, operand 1, single buffered']
    #allocation6 [shape = 's32[1]{0}', space=sflag, size = 0x4, scoped, tag = 'scoped memory for tpu_custom_call.1']
    #allocation7 [shape = 'u8[1536]{0}', space=vmem, size = 0x800, scoped, tag = 'input window, operand 2, single buffered']
    #allocation8 [shape = 'u8[65536]{0}', space=vmem, size = 0x10000, scoped, tag = 'input window, operand 3, single buffered']
    #allocation9 [shape = 's32[1]{0}', space=sflag, size = 0x4, scoped, tag = 'scoped memory for tpu_custom_call.1']
    #allocation10 [shape = 'u8[512]{0}', space=vmem, size = 0x400, scoped, tag = 'input window, operand 4, single buffered']
    #allocation11 [shape = 'u8[8192]{0}', space=vmem, size = 0x2000, scoped, tag = 'output window, operand 0']
    %10 = vsyncpa [#allocation3], 0
    %s11 = scalar_lea.sflag [#allocation3], 1
    %12 = vsyncpa %s11, 0
    %13 = vsyncpa [#allocation6], 0
    %14 = vsyncpa [#allocation9], 0
    %15 = vsyncpa [#allocation4], 0
    %s16 = scalar_lea.sflag [#allocation4], 1
    %17 = vsyncpa %s16, 0
    loop: start=0, step=1, limit=4
    $region2: #{tpu_custom_call.1} parent=1 // loop_pre_header
      _
    $region3: #{tpu_custom_call.1} parent=1 // loop_header
      %s19 = sphi 0, %s23
      %p20 = scmp.ge.s32.totalorder %s19, 4
      %s29 = sphi 0, %s31
      %s32 = sphi 0, %s29
      %s33 = sphi 0, %s32
      %s49 = sphi 0, %s33
      %s53 = sphi 0, %s53
      %s55 = sphi 0, %s53
      %s56 = sphi 0, %s55
      %s70 = sphi 0, %s56
      %s74 = sphi 0, %s74
      %s76 = sphi 0, %s74
      %s77 = sphi 0, %s76
      %s91 = sphi 0, %s77
      %s95 = sphi 0, %s95
      %s97 = sphi 0, %s95
      %s98 = sphi 0, %s97
      %s112 = sphi 0, %s98
      %s116 = sphi 0, %s116
      %s118 = sphi 0, %s116
      %s119 = sphi 0, %s118
      %s133 = sphi 0, %s119
      %s139 = sphi 0, %s141
      %s142 = sphi 0, %s139
      %s143 = sphi 0, %s142
      %s159 = sphi 0, %s143
    $region4: #{tpu_custom_call.1} parent=1 // loop_header_branch
      %22 = sbr.rel (%p20) target = $region8
    $region5: #{tpu_custom_call.1} parent=1 // loop_body
      %s24 = ssub.s32 %s19, 1
      %s25 = ssub.s32 %s19, 2
      %s26 = sadd.s32 %s19, 1
      %s27 = ssub.s32 %s19, %s26
      %p28 = scmp.eq.s32.totalorder %s27, 0
      %s30 = sadd.s32 %s29, 1
      %s31 = scalar_select %p28, %s29, %s30
      %p34 = pneg %p28
      %p35 = scmp.eq.s32.totalorder %s19, 1
      %p36 = por %p34, %p35
      %p37 = scmp.ne.s32.totalorder %s29, %s32
      %p38 = scmp.eq.s32.totalorder %s19, 0
      %p39 = por %p37, %p38
      %p40 = scmp.ne.s32.totalorder %s29, %s32
      %p41 = scmp.eq.s32.totalorder %s24, 1
      %p42 = por %p40, %p41
      %p43 = scmp.ne.s32.totalorder %s32, %s33
      %p44 = scmp.eq.s32.totalorder %s24, 0
      %p45 = por %p43, %p44
      %p46 = scmp.ne.s32.totalorder %s32, %s33
      %p47 = scmp.eq.s32.totalorder %s25, 1
      %p48 = por %p46, %p47
      %p50 = scmp.ne.s32.totalorder %s33, %s49
      %p51 = scmp.eq.s32.totalorder %s25, 0
      %p52 = por %p50, %p51
      %s54 = sadd.s32 %s53, 1
      %p57 = scmp.eq.s32.totalorder %s19, 1
      %p58 = scmp.ne.s32.totalorder %s53, %s55
      %p59 = scmp.eq.s32.totalorder %s19, 0
      %p60 = por %p58, %p59
      %p61 = scmp.ne.s32.totalorder %s53, %s55
      %p62 = scmp.eq.s32.totalorder %s24, 1
      %p63 = por %p61, %p62
      %p64 = scmp.ne.s32.totalorder %s55, %s56
      %p65 = scmp.eq.s32.totalorder %s24, 0
      %p66 = por %p64, %p65
      %p67 = scmp.ne.s32.totalorder %s55, %s56
      %p68 = scmp.eq.s32.totalorder %s25, 1
      %p69 = por %p67, %p68
      %p71 = scmp.ne.s32.totalorder %s56, %s70
      %p72 = scmp.eq.s32.totalorder %s25, 0
      %p73 = por %p71, %p72
      %s75 = sadd.s32 %s74, 1
      %p78 = scmp.eq.s32.totalorder %s19, 1
      %p79 = scmp.ne.s32.totalorder %s74, %s76
      %p80 = scmp.eq.s32.totalorder %s19, 0
      %p81 = por %p79, %p80
      %p82 = scmp.ne.s32.totalorder %s74, %s76
      %p83 = scmp.eq.s32.totalorder %s24, 1
      %p84 = por %p82, %p83
      %p85 = scmp.ne.s32.totalorder %s76, %s77
      %p86 = scmp.eq.s32.totalorder %s24, 0
      %p87 = por %p85, %p86
      %p88 = scmp.ne.s32.totalorder %s76, %s77
      %p89 = scmp.eq.s32.totalorder %s25, 1
      %p90 = por %p88, %p89
      %p92 = scmp.ne.s32.totalorder %s77, %s91
      %p93 = scmp.eq.s32.totalorder %s25, 0
      %p94 = por %p92, %p93
      %s96 = sadd.s32 %s95, 1
      %p99 = scmp.eq.s32.totalorder %s19, 1
      %p100 = scmp.ne.s32.totalorder %s95, %s97
      %p101 = scmp.eq.s32.totalorder %s19, 0
      %p102 = por %p100, %p101
      %p103 = scmp.ne.s32.totalorder %s95, %s97
      %p104 = scmp.eq.s32.totalorder %s24, 1
      %p105 = por %p103, %p104
      %p106 = scmp.ne.s32.totalorder %s97, %s98
      %p107 = scmp.eq.s32.totalorder %s24, 0
      %p108 = por %p106, %p107
      %p109 = scmp.ne.s32.totalorder %s97, %s98
      %p110 = scmp.eq.s32.totalorder %s25, 1
      %p111 = por %p109, %p110
      %p113 = scmp.ne.s32.totalorder %s98, %s112
      %p114 = scmp.eq.s32.totalorder %s25, 0
      %p115 = por %p113, %p114
      %s117 = sadd.s32 %s116, 1
      %p120 = scmp.eq.s32.totalorder %s19, 1
      %p121 = scmp.ne.s32.totalorder %s116, %s118
      %p122 = scmp.eq.s32.totalorder %s19, 0
      %p123 = por %p121, %p122
      %p124 = scmp.ne.s32.totalorder %s116, %s118
      %p125 = scmp.eq.s32.totalorder %s24, 1
      %p126 = por %p124, %p125
      %p127 = scmp.ne.s32.totalorder %s118, %s119
      %p128 = scmp.eq.s32.totalorder %s24, 0
      %p129 = por %p127, %p128
      %p130 = scmp.ne.s32.totalorder %s118, %s119
      %p131 = scmp.eq.s32.totalorder %s25, 1
      %p132 = por %p130, %p131
      %p134 = scmp.ne.s32.totalorder %s119, %s133
      %p135 = scmp.eq.s32.totalorder %s25, 0
      %p136 = por %p134, %p135
      %s137 = ssub.s32 %s19, %s26
      %p138 = scmp.eq.s32.totalorder %s137, 0
      %s140 = sadd.s32 %s139, 1
      %s141 = scalar_select %p138, %s139, %s140
      %p144 = pneg %p138
      %p145 = scmp.eq.s32.totalorder %s19, 1
      %p146 = por %p144, %p145
      %p147 = scmp.ne.s32.totalorder %s139, %s142
      %p148 = scmp.eq.s32.totalorder %s19, 0
      %p149 = por %p147, %p148
      %p150 = scmp.ne.s32.totalorder %s139, %s142
      %p151 = scmp.eq.s32.totalorder %s24, 1
      %p152 = por %p150, %p151
      %p153 = scmp.ne.s32.totalorder %s142, %s143
      %p154 = scmp.eq.s32.totalorder %s24, 0
      %p155 = por %p153, %p154
      %p156 = scmp.ne.s32.totalorder %s142, %s143
      %p157 = scmp.eq.s32.totalorder %s25, 1
      %p158 = por %p156, %p157
      %p160 = scmp.ne.s32.totalorder %s143, %s159
      %p161 = scmp.eq.s32.totalorder %s25, 0
      %p162 = por %p160, %p161
      %p163 = scmp.le.s32.totalorder 1, %s19
      %p164 = scmp.lt.s32.totalorder %s19, 3
      %p165 = pnand %p163, %p164
      %p166 = pneg %p165
      // Predicated region
      $region9: #{tpu_custom_call.1} parent=5 // pred_check
        _
      $region10: #{tpu_custom_call.1} parent=5 // pred_check_branch
        %168 = sbr.rel (%p165) target = $region12
      $region11: #{tpu_custom_call.1} parent=5 // pred_region
        %s169 = ssub.s32 %s19, 1
        // Predicated region
        $region13: #{tpu_custom_call.1} parent=11 // pred_check
          %p170 = pneg %p66
        $region14: #{tpu_custom_call.1} parent=11 // pred_check_branch
          %172 = sbr.rel (%p170) target = $region16
        $region15: #{tpu_custom_call.1} parent=11 // pred_region
          %s174 = ssub.s32 1536, 1536
          %175 = vsyncadd [#allocation6], %s174
          %s176 = sshll.u32 [#allocation5], 4
          %s177 = int_to_ptr.vmem [resolvable:$true] %s176
          %182 = dma.hbm_to_vmem [thread:$0]  %s1, 1536, %s177, [#allocation6], 384, 384, 24
        $region16: #{tpu_custom_call.1} parent=11 // pred_fallthru
          _
        // Predicated region
        $region17: #{tpu_custom_call.1} parent=11 // pred_check
          %p183 = pneg %p87
        $region18: #{tpu_custom_call.1} parent=11 // pred_check_branch
          %185 = sbr.rel (%p183) target = $region20
        $region19: #{tpu_custom_call.1} parent=11 // pred_region
          %s187 = ssub.s32 48, 48
          %188 = vsyncadd [#allocation6], %s187
          %s190 = sshll.u32 [#allocation7], 4
          %s191 = int_to_ptr.vmem [resolvable:$true] %s190
          %193 = dma.hbm_to_vmem [thread:$0]  %s2, 48, %s191, [#allocation6]
        $region20: #{tpu_custom_call.1} parent=11 // pred_fallthru
          _
        // Predicated region
        $region21: #{tpu_custom_call.1} parent=11 // pred_check
          %p194 = pneg %p108
        $region22: #{tpu_custom_call.1} parent=11 // pred_check_branch
          %196 = sbr.rel (%p194) target = $region24
        $region23: #{tpu_custom_call.1} parent=11 // pred_region
          %s198 = ssub.s32 2048, 2048
          %199 = vsyncadd [#allocation9], %s198
          %s200 = sshll.u32 [#allocation8], 4
          %s201 = int_to_ptr.vmem [resolvable:$true] %s200
          %206 = dma.hbm_to_vmem [thread:$0]  %s3, 2048, %s201, [#allocation9], 128, 128, 8
        $region24: #{tpu_custom_call.1} parent=11 // pred_fallthru
          _
        // Predicated region
        $region25: #{tpu_custom_call.1} parent=11 // pred_check
          %p207 = pneg %p129
        $region26: #{tpu_custom_call.1} parent=11 // pred_check_branch
          %209 = sbr.rel (%p207) target = $region28
        $region27: #{tpu_custom_call.1} parent=11 // pred_region
          %s211 = ssub.s32 16, 16
          %212 = vsyncadd [#allocation9], %s211
          %s214 = sshll.u32 [#allocation10], 4
          %s215 = int_to_ptr.vmem [resolvable:$true] %s214
          %217 = dma.hbm_to_vmem [thread:$0]  %s4, 16, %s215, [#allocation9]
        $region28: #{tpu_custom_call.1} parent=11 // pred_fallthru
          _
      $region12: #{tpu_custom_call.1} parent=5 // pred_fallthru
        _
      %p218 = scmp.lt.s32.totalorder %s19, 2
      // Predicated region
      $region29: #{tpu_custom_call.1} parent=5 // pred_check
        %p219 = pneg %p218
      $region30: #{tpu_custom_call.1} parent=5 // pred_check_branch
        %221 = sbr.rel (%p219) target = $region32
      $region31: #{tpu_custom_call.1} parent=5 // pred_region
        // Predicated region
        $region33: #{tpu_custom_call.1} parent=31 // pred_check
          %p222 = pneg %p39
        $region34: #{tpu_custom_call.1} parent=31 // pred_check_branch
          %224 = sbr.rel (%p222) target = $region36
        $region35: #{tpu_custom_call.1} parent=31 // pred_region
          %s225 = sand.u32 %s29, 1
          %s226 = scalar_lea.sflag [#allocation3], %s225
          %s227 = sand.u32 %s29, 1
          %s228 = smul.addr %s227, 8
          %s229 = scalar_lea.vmem [#allocation2], %s228
          %s231 = ssub.s32 128, 128
          %232 = vsyncadd %s226, %s231
          %s233 = smul.addr %s19, 128
          %s234 = scalar_lea.hbm %s0, %s233
          %s236 = sshll.u32 %s229, 4
          %s237 = int_to_ptr.vmem [resolvable:$true] %s236
          %239 = dma.hbm_to_vmem [thread:$0]  %s234, 128, %s237, %s226
        $region36: #{tpu_custom_call.1} parent=31 // pred_fallthru
          _
      $region32: #{tpu_custom_call.1} parent=5 // pred_fallthru
        _
      %p240 = scmp.le.s32.totalorder 1, %s19
      %p241 = scmp.lt.s32.totalorder %s19, 3
      %p242 = pnand %p240, %p241
      %p243 = pneg %p242
      // Predicated region
      $region37: #{tpu_custom_call.1} parent=5 // pred_check
        _
      $region38: #{tpu_custom_call.1} parent=5 // pred_check_branch
        %245 = sbr.rel (%p242) target = $region40
      $region39: #{tpu_custom_call.1} parent=5 // pred_region
        %s246 = ssub.s32 %s19, 1
        %s247 = sand.u32 %s32, 1
        %s248 = scalar_lea.sflag [#allocation3], %s247
        %s249 = sand.u32 %s32, 1
        %s250 = smul.addr %s249, 8
        %s251 = scalar_lea.vmem [#allocation2], %s250
        // Predicated region
        $region41: #{tpu_custom_call.1} parent=39 // pred_check
          %p252 = pneg %p45
        $region42: #{tpu_custom_call.1} parent=39 // pred_check_branch
          %254 = sbr.rel (%p252) target = $region44
        $region43: #{tpu_custom_call.1} parent=39 // pred_region
          %255 = dma.done %s248, 128
        $region44: #{tpu_custom_call.1} parent=39 // pred_fallthru
          _
        // Predicated region
        $region45: #{tpu_custom_call.1} parent=39 // pred_check
          %p256 = pneg %p66
        $region46: #{tpu_custom_call.1} parent=39 // pred_check_branch
          %258 = sbr.rel (%p256) target = $region48
        $region47: #{tpu_custom_call.1} parent=39 // pred_region
          %259 = dma.done [#allocation6], 1536
        $region48: #{tpu_custom_call.1} parent=39 // pred_fallthru
          _
        // Predicated region
        $region49: #{tpu_custom_call.1} parent=39 // pred_check
          %p260 = pneg %p87
        $region50: #{tpu_custom_call.1} parent=39 // pred_check_branch
          %262 = sbr.rel (%p260) target = $region52
        $region51: #{tpu_custom_call.1} parent=39 // pred_region
          %263 = dma.done [#allocation6], 48
        $region52: #{tpu_custom_call.1} parent=39 // pred_fallthru
          _
        // Predicated region
        $region53: #{tpu_custom_call.1} parent=39 // pred_check
          %p264 = pneg %p108
        $region54: #{tpu_custom_call.1} parent=39 // pred_check_branch
          %266 = sbr.rel (%p264) target = $region56
        $region55: #{tpu_custom_call.1} parent=39 // pred_region
          %267 = dma.done [#allocation9], 2048
        $region56: #{tpu_custom_call.1} parent=39 // pred_fallthru
          _
        // Predicated region
        $region57: #{tpu_custom_call.1} parent=39 // pred_check
          %p268 = pneg %p129
        $region58: #{tpu_custom_call.1} parent=39 // pred_check_branch
          %270 = sbr.rel (%p268) target = $region60
        $region59: #{tpu_custom_call.1} parent=39 // pred_region
          %271 = dma.done [#allocation9], 16
        $region60: #{tpu_custom_call.1} parent=39 // pred_fallthru
          _
        %s272 = sand.u32 %s32, 1
        %s273 = scalar_lea.sflag [#allocation3], %s272
        %s274 = sand.u32 %s32, 1
        %s275 = smul.addr %s274, 8
        %s276 = scalar_lea.vmem [#allocation2], %s275
        %p277 = pneg %p45
        %p278 = pneg %p42
        %p279 = pneg %p66
        %p280 = pneg %p63
        %p281 = pneg %p87
        %p282 = pneg %p84
        %p283 = pneg %p108
        %p284 = pneg %p105
        %p285 = pneg %p129
        %p286 = pneg %p126
        %p287 = pneg %p155
        %p288 = pneg %p152
        %s289 = sand.u32 %s142, 1
        %s290 = scalar_lea.sflag [#allocation4], %s289
        %s291 = sand.u32 %s142, 1
        %s292 = smul.addr %s291, 8
        %s293 = scalar_lea.vmem [#allocation11], %s292
        %v294 = vld [vmem:[%s251] sm:$0xff]
        %v295 = vld [vmem:[#allocation5] sm:$0xff]
        %v296 = vld [vmem:[#allocation5 + $0x8] sm:$0xff]
        %v297 = vld [vmem:[#allocation5 + $0x10] sm:$0xff]
        %v298 = vld [vmem:[#allocation5 + $0x18] sm:$0xff]
        %v299 = vld [vmem:[#allocation5 + $0x20] sm:$0xff]
        %v300 = vld [vmem:[#allocation5 + $0x28] sm:$0xff]
        %v301 = vld [vmem:[#allocation5 + $0x30] sm:$0xff]
        %v302 = vld [vmem:[#allocation5 + $0x38] sm:$0xff]
        %v303 = vld [vmem:[#allocation5 + $0x40] sm:$0xff]
        %v304 = vld [vmem:[#allocation5 + $0x48] sm:$0xff]
        %v305 = vld [vmem:[#allocation5 + $0x50] sm:$0xff]
        %v306 = vld [vmem:[#allocation5 + $0x58] sm:$0xff]
        %v307 = vld [vmem:[#allocation7] sm:$0x7]
        %v309 = vlaneseq
        %v310 = vshrl.u32 %v309, 7
        %v311 = vsub.s32 0, %v310
        %v312 = vrot.slane %v307, %v311
        %v313 = vlaneseq
        %v314 = vshrl.u32 %v313, 7
        %v315 = vsub.s32 1, %v314
        %v316 = vrot.slane %v307, %v315
        %v317 = vlaneseq
        %v318 = vshrl.u32 %v317, 7
        %v319 = vsub.s32 2, %v318
        %v320 = vrot.slane %v307, %v319
        %vm324 = vcmask 261120
        %v326 = vsel %vm324, %v294, 0
        %328 = vmatprep.subr.mxu0 %v296
        %329 = vmatpush1.msra.mxu0 %v295
        %330 = vmatprep.subr.mxu0 %v299
        %331 = vmatpush1.msra.mxu0 %v298
        %332 = vmatprep.subr.mxu0 %v302
        %333 = vmatpush1.msra.mxu0 %v301
        %334 = vmatprep.subr.mxu0 %v305
        %335 = vmatpush1.msra.mxu0 %v304
        %336 = vmatprep.subr.mxu0 0.0
        %337 = vmatpush1.msra.mxu0 0.0
        %338 = vmatprep.subr.mxu0 0.0
        %339 = vmatpush1.msra.mxu0 0.0
        %340 = vmatprep.subr.mxu0 0.0
        %341 = vmatpush1.msra.mxu0 0.0
        %342 = vmatprep.subr.mxu0 0.0
        %343 = vmatpush1.msra.mxu0 0.0
        %344 = vmatprep.subr.mxu0 0.0
        %345 = vmatpush1.msra.mxu0 0.0
        %346 = vmatprep.subr.mxu0 0.0
        %347 = vmatpush1.msra.mxu0 0.0
        %348 = vmatprep.subr.mxu0 0.0
        %349 = vmatpush1.msra.mxu0 0.0
        %350 = vmatprep.subr.mxu0 0.0
        %351 = vmatpush1.msra.mxu0 0.0
        %352 = vmatprep.subr.mxu0 0.0
        %353 = vmatpush1.msra.mxu0 0.0
        %354 = vmatprep.subr.mxu0 0.0
        %355 = vmatpush1.msra.mxu0 0.0
        %356 = vmatprep.subr.mxu0 0.0
        %357 = vmatpush1.msra.mxu0 0.0
        %358 = vmatprep.subr.mxu0 0.0
        %359 = vmatpush1.msra.mxu0 0.0
        %360 = vmatprep.subr.mxu0 0.0
        %361 = vmatpush1.msra.mxu0 0.0
        %362 = vmatprep.subr.mxu0 0.0
        %363 = vmatpush1.msra.mxu0 0.0
        %364 = vmatprep.subr.mxu0 0.0
        %365 = vmatpush1.msra.mxu0 0.0
        %366 = vmatprep.subr.mxu0 0.0
        %367 = vmatpush1.msra.mxu0 0.0
        %368 = vmatprep.subr.mxu0 0.0
        %369 = vmatpush1.msra.mxu0 0.0
        %370 = vmatprep.subr.mxu0 0.0
        %371 = vmatpush1.msra.mxu0 0.0
        %372 = vmatprep.subr.mxu0 0.0
        %373 = vmatpush1.msra.mxu0 0.0
        %374 = vmatprep.subr.mxu0 0.0
        %375 = vmatpush1.msra.mxu0 0.0
        %376 = vmatprep.subr.mxu0 0.0
        %377 = vmatpush1.msra.mxu0 0.0
        %378 = vmatprep.subr.mxu0 0.0
        %379 = vmatpush1.msra.mxu0 0.0
        %380 = vmatprep.subr.mxu0 0.0
        %381 = vmatpush1.msra.mxu0 0.0
        %382 = vmatprep.subr.mxu0 0.0
        %383 = vmatpush1.msra.mxu0 0.0
        %384 = vmatprep.subr.mxu0 0.0
        %385 = vmatpush1.msra.mxu0 0.0
        %386 = vmatprep.subr.mxu0 0.0
        %387 = vmatpush1.msra.mxu0 0.0
        %388 = vmatprep.subr.mxu0 0.0
        %389 = vmatpush1.msra.mxu0 0.0
        %390 = vmatprep.subr.mxu0 0.0
        %391 = vmatpush1.msra.mxu0 0.0
        %392 = vmatprep.mubr.f32.mxu0 0.0
        %393 = vmatmul.mubr.f32.gmra.mrb[0].mxu0 %v326
        %v394 = vpop.f32.mrb[0].mxu0
        %v395 = vadd.f32 %v312, %v394
        %v396 = vpop.f32.mrb[0].mxu0
        %v397 = vadd.f32 %v316, %v396
        %398 = vdwg.mxu0
        %399 = vmatprep.subr.mxu0 0.0
        %400 = vmatpush1.msra.mxu0 %v297
        %401 = vmatprep.subr.mxu0 0.0
        %402 = vmatpush1.msra.mxu0 %v300
        %403 = vmatprep.subr.mxu0 0.0
        %404 = vmatpush1.msra.mxu0 %v303
        %405 = vmatprep.subr.mxu0 0.0
        %406 = vmatpush1.msra.mxu0 %v306
        %407 = vmatprep.subr.mxu0 0.0
        %408 = vmatpush1.msra.mxu0 0.0
        %409 = vmatprep.subr.mxu0 0.0
        %410 = vmatpush1.msra.mxu0 0.0
        %411 = vmatprep.subr.mxu0 0.0
        %412 = vmatpush1.msra.mxu0 0.0
        %413 = vmatprep.subr.mxu0 0.0
        %414 = vmatpush1.msra.mxu0 0.0
        %415 = vmatprep.subr.mxu0 0.0
        %416 = vmatpush1.msra.mxu0 0.0
        %417 = vmatprep.subr.mxu0 0.0
        %418 = vmatpush1.msra.mxu0 0.0
        %419 = vmatprep.subr.mxu0 0.0
        %420 = vmatpush1.msra.mxu0 0.0
        %421 = vmatprep.subr.mxu0 0.0
        %422 = vmatpush1.msra.mxu0 0.0
        %423 = vmatprep.subr.mxu0 0.0
        %424 = vmatpush1.msra.mxu0 0.0
        %425 = vmatprep.subr.mxu0 0.0
        %426 = vmatpush1.msra.mxu0 0.0
        %427 = vmatprep.subr.mxu0 0.0
        %428 = vmatpush1.msra.mxu0 0.0
        %429 = vmatprep.subr.mxu0 0.0
        %430 = vmatpush1.msra.mxu0 0.0
        %431 = vmatprep.subr.mxu0 0.0
        %432 = vmatpush1.msra.mxu0 0.0
        %433 = vmatprep.subr.mxu0 0.0
        %434 = vmatpush1.msra.mxu0 0.0
        %435 = vmatprep.subr.mxu0 0.0
        %436 = vmatpush1.msra.mxu0 0.0
        %437 = vmatprep.subr.mxu0 0.0
        %438 = vmatpush1.msra.mxu0 0.0
        %439 = vmatprep.subr.mxu0 0.0
        %440 = vmatpush1.msra.mxu0 0.0
        %441 = vmatprep.subr.mxu0 0.0
        %442 = vmatpush1.msra.mxu0 0.0
        %443 = vmatprep.subr.mxu0 0.0
        %444 = vmatpush1.msra.mxu0 0.0
        %445 = vmatprep.subr.mxu0 0.0
        %446 = vmatpush1.msra.mxu0 0.0
        %447 = vmatprep.subr.mxu0 0.0
        %448 = vmatpush1.msra.mxu0 0.0
        %449 = vmatprep.subr.mxu0 0.0
        %450 = vmatpush1.msra.mxu0 0.0
        %451 = vmatprep.subr.mxu0 0.0
        %452 = vmatpush1.msra.mxu0 0.0
        %453 = vmatprep.subr.mxu0 0.0
        %454 = vmatpush1.msra.mxu0 0.0
        %455 = vmatprep.subr.mxu0 0.0
        %456 = vmatpush1.msra.mxu0 0.0
        %457 = vmatprep.subr.mxu0 0.0
        %458 = vmatpush1.msra.mxu0 0.0
        %459 = vmatprep.subr.mxu0 0.0
        %460 = vmatpush1.msra.mxu0 0.0
        %461 = vmatprep.subr.mxu0 0.0
        %462 = vmatpush1.msra.mxu0 0.0
        %463 = vmatprep.mubr.f32.mxu0 0.0
        %464 = vmatmul.mubr.f32.gmra.mrb[0].mxu0 %v326
        %v465 = vpop.f32.mrb[0].mxu0
        %v466 = vadd.f32 %v320, %v465
        %v467 = vpop.f32.mrb[0].mxu0
        %468 = vdwg.mxu0
        %v469 = vmin.f32 %v395, 20.0
        %v470 = vmul.f32 %v469, 1.442695
        %v471 = vpow.pop %v470
        %v472 = vadd.f32 %v471, 2.0
        %v473 = vmul.f32 %v471, %v472
        %v474 = vadd.f32 %v473, 2.0
        %v475 = vrcp.pop %v474
        %v476 = vmul.f32 %v473, %v475
        %v477 = vmul.f32 %v395, %v476
        %v478 = vmul.f32 %v477, %v397
        %v479 = vld [vmem:[#allocation8] sm:$0xff]
        %v480 = vld [vmem:[#allocation8 + $0x8] sm:$0xff]
        %v481 = vld [vmem:[#allocation8 + $0x10] sm:$0xff]
        %v482 = vld [vmem:[#allocation8 + $0x18] sm:$0xff]
        %v483 = vld [vmem:[#allocation8 + $0x20] sm:$0xff]
        %v484 = vld [vmem:[#allocation8 + $0x28] sm:$0xff]
        %v485 = vld [vmem:[#allocation8 + $0x30] sm:$0xff]
        %v486 = vld [vmem:[#allocation8 + $0x38] sm:$0xff]
        %v487 = vld [vmem:[#allocation8 + $0x40] sm:$0xff]
        %v488 = vld [vmem:[#allocation8 + $0x48] sm:$0xff]
        %v489 = vld [vmem:[#allocation8 + $0x50] sm:$0xff]
        %v490 = vld [vmem:[#allocation8 + $0x58] sm:$0xff]
        %v491 = vld [vmem:[#allocation8 + $0x60] sm:$0xff]
        %v492 = vld [vmem:[#allocation8 + $0x68] sm:$0xff]
        %v493 = vld [vmem:[#allocation8 + $0x70] sm:$0xff]
        %v494 = vld [vmem:[#allocation8 + $0x78] sm:$0xff]
        %v495 = vld [vmem:[#allocation10] sm:$0x1]
        %v497 = vlaneseq
        %v498 = vshrl.u32 %v497, 7
        %v499 = vsub.s32 0, %v498
        %v500 = vrot.slane %v495, %v499
        %502 = vmatprep.subr.mxu0 0.0
        %503 = vmatpush1.msra.mxu0 %v479
        %504 = vmatprep.subr.mxu0 0.0
        %505 = vmatpush1.msra.mxu0 %v480
        %506 = vmatprep.subr.mxu0 0.0
        %507 = vmatpush1.msra.mxu0 %v481
        %508 = vmatprep.subr.mxu0 0.0
        %509 = vmatpush1.msra.mxu0 %v482
        %510 = vmatprep.subr.mxu0 0.0
        %511 = vmatpush1.msra.mxu0 %v483
        %512 = vmatprep.subr.mxu0 0.0
        %513 = vmatpush1.msra.mxu0 %v484
        %514 = vmatprep.subr.mxu0 0.0
        %515 = vmatpush1.msra.mxu0 %v485
        %516 = vmatprep.subr.mxu0 0.0
        %517 = vmatpush1.msra.mxu0 %v486
        %518 = vmatprep.subr.mxu0 0.0
        %519 = vmatpush1.msra.mxu0 %v487
        %520 = vmatprep.subr.mxu0 0.0
        %521 = vmatpush1.msra.mxu0 %v488
        %522 = vmatprep.subr.mxu0 0.0
        %523 = vmatpush1.msra.mxu0 %v489
        %524 = vmatprep.subr.mxu0 0.0
        %525 = vmatpush1.msra.mxu0 %v490
        %526 = vmatprep.subr.mxu0 0.0
        %527 = vmatpush1.msra.mxu0 %v491
        %528 = vmatprep.subr.mxu0 0.0
        %529 = vmatpush1.msra.mxu0 %v492
        %530 = vmatprep.subr.mxu0 0.0
        %531 = vmatpush1.msra.mxu0 %v493
        %532 = vmatprep.subr.mxu0 0.0
        %533 = vmatpush1.msra.mxu0 %v494
        %534 = vmatprep.subr.mxu0 0.0
        %535 = vmatpush1.msra.mxu0 0.0
        %536 = vmatprep.subr.mxu0 0.0
        %537 = vmatpush1.msra.mxu0 0.0
        %538 = vmatprep.subr.mxu0 0.0
        %539 = vmatpush1.msra.mxu0 0.0
        %540 = vmatprep.subr.mxu0 0.0
        %541 = vmatpush1.msra.mxu0 0.0
        %542 = vmatprep.subr.mxu0 0.0
        %543 = vmatpush1.msra.mxu0 0.0
        %544 = vmatprep.subr.mxu0 0.0
        %545 = vmatpush1.msra.mxu0 0.0
        %546 = vmatprep.subr.mxu0 0.0
        %547 = vmatpush1.msra.mxu0 0.0
        %548 = vmatprep.subr.mxu0 0.0
        %549 = vmatpush1.msra.mxu0 0.0
        %550 = vmatprep.subr.mxu0 0.0
        %551 = vmatpush1.msra.mxu0 0.0
        %552 = vmatprep.subr.mxu0 0.0
        %553 = vmatpush1.msra.mxu0 0.0
        %554 = vmatprep.subr.mxu0 0.0
        %555 = vmatpush1.msra.mxu0 0.0
        %556 = vmatprep.subr.mxu0 0.0
        %557 = vmatpush1.msra.mxu0 0.0
        %558 = vmatprep.subr.mxu0 0.0
        %559 = vmatpush1.msra.mxu0 0.0
        %560 = vmatprep.subr.mxu0 0.0
        %561 = vmatpush1.msra.mxu0 0.0
        %562 = vmatprep.subr.mxu0 0.0
        %563 = vmatpush1.msra.mxu0 0.0
        %564 = vmatprep.subr.mxu0 0.0
        %565 = vmatpush1.msra.mxu0 0.0
        %566 = vmatprep.mubr.f32.mxu0 0.0
        %567 = vmatmul.mubr.f32.gmra.mrb[0].mxu0 %v478
        %v568 = vpop.f32.mrb[0].mxu0
        %v569 = vadd.f32 %v500, %v568
        %v570 = vpop.f32.mrb[0].mxu0
        %571 = vdwg.mxu0
        %v572 = vsub.f32 0.0, %v466
        %v573 = vmin.f32 %v572, 30.0
        %v574 = vmul.f32 %v573, 1.442695
        %v575 = vpow.pop %v574
        %v576 = vadd.f32 %v575, 1.0
        %v577 = vrcp.pop %v576
        %v578 = vmul.f32 %v577, %v569
        %579 = vst.msk [vmem:[%s293] sm:$0xff] %vm324, %v578
        %s580 = sand.u32 %s142, 1
        %s581 = scalar_lea.sflag [#allocation4], %s580
        %s582 = sand.u32 %s142, 1
        %s583 = smul.addr %s582, 8
        %s584 = scalar_lea.vmem [#allocation11], %s583
        // Predicated region
        $region61: #{tpu_custom_call.1} parent=39 // pred_check
          %p585 = pneg %p152
        $region62: #{tpu_custom_call.1} parent=39 // pred_check_branch
          %587 = sbr.rel (%p585) target = $region64
        $region63: #{tpu_custom_call.1} parent=39 // pred_region
          %s589 = ssub.s32 128, 128
          %590 = vsyncadd %s581, %s589
          %s591 = smul.addr %s24, 128
          %s592 = scalar_lea.hbm %s5, %s591
          %s594 = sshll.u32 %s584, 4
          %s595 = int_to_ptr.vmem [resolvable:$true] %s594
          %597 = dma.vmem_to_hbm [thread:$0]  %s595, 128, %s592, %s581
        $region64: #{tpu_custom_call.1} parent=39 // pred_fallthru
          _
      $region40: #{tpu_custom_call.1} parent=5 // pred_fallthru
        _
      %p598 = scmp.le.s32.totalorder 2, %s19
      // Predicated region
      $region65: #{tpu_custom_call.1} parent=5 // pred_check
        %p599 = pneg %p598
      $region66: #{tpu_custom_call.1} parent=5 // pred_check_branch
        %601 = sbr.rel (%p599) target = $region68
      $region67: #{tpu_custom_call.1} parent=5 // pred_region
        %s602 = ssub.s32 %s19, 2
        // Predicated region
        $region69: #{tpu_custom_call.1} parent=67 // pred_check
          %p603 = pneg %p158
        $region70: #{tpu_custom_call.1} parent=67 // pred_check_branch
          %605 = sbr.rel (%p603) target = $region72
        $region71: #{tpu_custom_call.1} parent=67 // pred_region
          %s606 = sand.u32 %s143, 1
          %s607 = scalar_lea.sflag [#allocation4], %s606
          %s608 = sand.u32 %s143, 1
          %s609 = smul.addr %s608, 8
          %s610 = scalar_lea.vmem [#allocation11], %s609
          %611 = dma.done %s607, 128
        $region72: #{tpu_custom_call.1} parent=67 // pred_fallthru
          _
      $region68: #{tpu_custom_call.1} parent=5 // pred_fallthru
        _
    $region6: #{tpu_custom_call.1} parent=1 // loop_footer
      %s23 = sadd.s32 1, %s19
    $region7: #{tpu_custom_call.1} parent=1 // loop_footer_branch
      %18 = sbr.rel target = $region3
    $region8: #{tpu_custom_call.1} parent=1 // loop_exit
      _
    %612 = vsyncpa [#allocation3], 1
    %s613 = scalar_lea.sflag [#allocation3], 1
    %614 = vsyncpa %s613, 1
    %615 = vsyncpa [#allocation6], 1
    %616 = vsyncpa [#allocation9], 1
    %617 = vsyncpa [#allocation4], 1
    %s618 = scalar_lea.sflag [#allocation4], 1
    %619 = vsyncpa %s618, 1

</llo_original>
